<compile_context>
chip_gen: v5e
topology: v5e:2x2
jax: 0.10.0
libtpu: 0.0.40
codegen_flags: <defaults>
</compile_context>

<pallas_src>
import jax
import jax.numpy as jnp
from jax.experimental import pallas as pl
from jax.experimental.pallas import tpu as pltpu


def _logreg_kernel(b_ref, x_ref, w_ref, o_ref, acc_ref):
    # b_ref: SMEM (1,) f32 (scalar prefetch)
    # x_ref: (tile_b, tile_d) VMEM (native dtype)   w_ref: (1, tile_d) VMEM
    # o_ref: (tile_b, 1) VMEM                        acc_ref: (tile_b, 1) f32 VMEM
    k = pl.program_id(1)

    @pl.when(k == 0)
    def _():
        acc_ref[...] = jnp.zeros_like(acc_ref)

    x = x_ref[...].astype(jnp.float32)            # in-kernel upcast (free VPU work)
    w = w_ref[...].astype(jnp.float32)            # (1, tile_d) broadcasts over rows

    d = x.shape[-1]
    ch = 128
    nfull = d // ch
    rem = d - nfull * ch
    if 1 <= nfull <= 64:
        # Accumulate 128-lane chunks on the VPU; a single XLU lane reduce at the end.
        part = x[:, :ch] * w[:, :ch]
        for c in range(1, nfull):
            s = c * ch
            part = part + x[:, s:s + ch] * w[:, s:s + ch]
        z = jnp.sum(part, axis=-1, keepdims=True)
        if rem:
            z = z + jnp.sum(x[:, nfull * ch:] * w[:, nfull * ch:],
                            axis=-1, keepdims=True)
    else:
        # Tiny D (< 128) or huge unroll: let Mosaic lower the reduce directly.
        z = jnp.sum(x * w, axis=-1, keepdims=True)

    acc_ref[...] += z

    @pl.when(k == pl.num_programs(1) - 1)
    def _():
        zb = acc_ref[...] + b_ref[0]
        # exact sigmoid: exp + exact reciprocal both ride the idle EUP slot
        o_ref[...] = (1.0 / (1.0 + jnp.exp(-zb))).astype(o_ref.dtype)


def _vmem_limit_bytes():
    """Per-generation scoped-VMEM limit: half the physical capacity, capped at 64 MiB."""
    try:
        cap = int(pltpu.get_tpu_info().vmem_capacity_bytes)
    except Exception:
        cap = 64 << 20          # conservative (v7x-sized) fallback
    return int(max(16 << 20, min(cap // 2, 64 << 20)))


def _choose_tiles(batch, input_dim, itemsize, vmem_limit):
    """Pick (tile_b, tile_d): largest double-bufferable x block, >=2 batch blocks."""
    target = min(8 << 20, vmem_limit // 4)        # per x-block budget (2x buffered)

    # Tile the feature axis only if even an 8-row full-width block blows the
    # budget, and only when D % 128 == 0 so the reduction never sees padding.
    if 8 * input_dim * itemsize > target and input_dim % 128 == 0:
        tile_d = (target // (8 * itemsize)) // 128 * 128
        tile_d = int(max(128, min(tile_d, 8192, input_dim)))
    else:
        tile_d = int(input_dim)

    rows = (target // (tile_d * itemsize)) // 8 * 8
    tile_b = int(max(8, rows))

    if batch <= 8:
        tile_b = int(batch)                       # full-extent block (always legal)
    else:
        # Guarantee >= 2 batch blocks so v7x megacore shards work across both TCs.
        half = -(-batch // 2)                     # ceil(batch / 2)
        half = -(-half // 8) * 8                  # round up to a multiple of 8
        tile_b = int(min(tile_b, max(8, half)))
    return tile_b, tile_d


def logistic_regression_forward(x, weight, bias):
    """x: (B, D), weight: (1, D), bias: (1,) -> sigmoid(x @ W^T + b), shape (B, 1)."""
    B, D = x.shape
    assert weight.shape == (1, D)
    b = bias.reshape(-1).astype(jnp.float32)      # (1,) -> SMEM scalar prefetch

    itemsize = jnp.dtype(x.dtype).itemsize
    vmem_limit = _vmem_limit_bytes()
    tile_b, tile_d = _choose_tiles(B, D, itemsize, vmem_limit)
    grid = (pl.cdiv(B, tile_b), pl.cdiv(D, tile_d))

    # Headroom guard for pathological shapes (normally equals the base limit).
    block_bytes = tile_b * tile_d * itemsize
    vmem_limit = int(max(vmem_limit, 2 * block_bytes + (4 << 20)))

    return pl.pallas_call(
        _logreg_kernel,
        out_shape=jax.ShapeDtypeStruct((B, 1), x.dtype),
        grid_spec=pltpu.PrefetchScalarGridSpec(
            num_scalar_prefetch=1,                 # bias lands in SMEM
            grid=grid,
            in_specs=[
                pl.BlockSpec((tile_b, tile_d), lambda i, k, b_sref: (i, k)),  # x
                pl.BlockSpec((1, tile_d), lambda i, k, b_sref: (0, k)),       # weight
            ],
            out_specs=pl.BlockSpec((tile_b, 1), lambda i, k, b_sref: (i, 0)),
            scratch_shapes=[pltpu.VMEM((tile_b, 1), jnp.float32)],            # acc
        ),
        compiler_params=pltpu.CompilerParams(
            dimension_semantics=("parallel", "arbitrary"),  # batch parallel, D reduce
            vmem_limit_bytes=vmem_limit,
        ),
    )(b, x, weight)


def _reference(x, weight, bias):
    z = x.astype(jnp.float32) @ weight.astype(jnp.float32).T + bias.astype(jnp.float32)
    return jax.nn.sigmoid(z)


if __name__ == "__main__":
    key = jax.random.PRNGKey(0)
    kx, kw, kb = jax.random.split(key, 3)

    # Small shapes matching the module: (batch_size, input_dim) -> (batch_size, 1)
    batch, input_dim = 8, 32
    x = jax.random.normal(kx, (batch, input_dim), dtype=jnp.float32)

    # Deterministic init mimicking nn.Linear's uniform(-1/sqrt(D), 1/sqrt(D))
    bound = 1.0 / (input_dim ** 0.5)
    weight = jax.random.uniform(kw, (1, input_dim), minval=-bound, maxval=bound,
                                dtype=jnp.float32)
    bias = jax.random.uniform(kb, (1,), minval=-bound, maxval=bound, dtype=jnp.float32)

    out = jax.block_until_ready(logistic_regression_forward(x, weight, bias))
    ref = _reference(x, weight, bias)
    assert out.shape == (batch, 1)
    assert jnp.allclose(out, ref, atol=1e-5, rtol=1e-5), (
        f"small-shape mismatch, max diff {jnp.max(jnp.abs(out - ref))}")

    # Larger batch: exercises the >=2-block batch grid (megacore path) + chunked reduce.
    kx2, kw2, kb2 = jax.random.split(jax.random.PRNGKey(1), 3)
    B2, D2 = 1024, 256
    x2 = jax.random.normal(kx2, (B2, D2), dtype=jnp.float32)
    bound2 = 1.0 / (D2 ** 0.5)
    w2 = jax.random.uniform(kw2, (1, D2), minval=-bound2, maxval=bound2, dtype=jnp.float32)
    b2 = jax.random.uniform(kb2, (1,), minval=-bound2, maxval=bound2, dtype=jnp.float32)

    out2 = jax.block_until_ready(logistic_regression_forward(x2, w2, b2))
    ref2 = _reference(x2, w2, b2)
    assert out2.shape == (B2, 1)
    assert jnp.allclose(out2, ref2, atol=1e-5, rtol=1e-5), (
        f"tiled-shape mismatch, max diff {jnp.max(jnp.abs(out2 - ref2))}")

    print("KERNEL_OK")
</pallas_src>

<mosaic_0001>
module attributes {stable_mosaic.version = 11 : i64} {
  func.func @_logreg_kernel(%arg0: i32, %arg1: i32, %arg2: memref<1xf32, #tpu.memory_space<smem>>, %arg3: memref<8x32xf32, #tpu.memory_space<vmem>>, %arg4: memref<1x32xf32, #tpu.memory_space<vmem>>, %arg5: memref<8x1xf32, #tpu.memory_space<vmem>>, %arg6: memref<8x1xf32, #tpu.memory_space<vmem>>) attributes {dimension_semantics = [#tpu.dimension_semantics<parallel>, #tpu.dimension_semantics<arbitrary>], iteration_bounds = array<i64: 1, 1>, scalar_prefetch = 1 : i64, scratch_operands = 1 : i64, tpu.core_type = #tpu.core_type<tc>, window_params = [{transform_indices = @transform_0, window_bounds = array<i64: 8, 32>}, {transform_indices = @transform_1, window_bounds = array<i64: 1, 32>}, {transform_indices = @transform_2, window_bounds = array<i64: 8, 1>}]} {
    %c0_i32 = arith.constant 0 : i32
    %0 = arith.cmpi eq, %arg1, %c0_i32 : i32
    %1 = arith.extui %0 : i1 to i32
    %c0_i32_0 = arith.constant 0 : i32
    %2 = arith.cmpi ne, %1, %c0_i32_0 : i32
    scf.if %2 {
      %cst_10 = arith.constant 0.000000e+00 : f32
      %15 = vector.broadcast %cst_10 : f32 to vector<8x1xf32>
      %c0_11 = arith.constant 0 : index
      %c0_12 = arith.constant 0 : index
      %16 = vector.load %arg6[%c0_11, %c0_12] : memref<8x1xf32, #tpu.memory_space<vmem>>, vector<8x1xf32>
      tpu.vector_store %arg6[%c0_11, %c0_12], %15 {strides = array<i32>} : memref<8x1xf32, #tpu.memory_space<vmem>>, vector<8x1xf32>,
    } else {
    }
    %c0 = arith.constant 0 : index
    %c0_1 = arith.constant 0 : index
    %3 = vector.load %arg3[%c0, %c0_1] : memref<8x32xf32, #tpu.memory_space<vmem>>, vector<8x32xf32>
    %c0_2 = arith.constant 0 : index
    %c0_3 = arith.constant 0 : index
    %4 = vector.load %arg4[%c0_2, %c0_3] : memref<1x32xf32, #tpu.memory_space<vmem>>, vector<1x32xf32>
    %5 = vector.broadcast %4 : vector<1x32xf32> to vector<8x32xf32>
    %6 = arith.mulf %3, %5 : vector<8x32xf32>
    %cst = arith.constant dense<0.000000e+00> : vector<8xf32>
    %7 = vector.multi_reduction <add>, %6, %cst [1] : vector<8x32xf32> to vector<8xf32>
    %8 = vector.shape_cast %7 : vector<8xf32> to vector<8x1xf32>
    %c0_4 = arith.constant 0 : index
    %c0_5 = arith.constant 0 : index
    %9 = vector.load %arg6[%c0_4, %c0_5] : memref<8x1xf32, #tpu.memory_space<vmem>>, vector<8x1xf32>
    %10 = arith.addf %9, %8 : vector<8x1xf32>
    %c0_6 = arith.constant 0 : index
    %c0_7 = arith.constant 0 : index
    %11 = vector.load %arg6[%c0_6, %c0_7] : memref<8x1xf32, #tpu.memory_space<vmem>>, vector<8x1xf32>
    tpu.vector_store %arg6[%c0_6, %c0_7], %10 {strides = array<i32>} : memref<8x1xf32, #tpu.memory_space<vmem>>, vector<8x1xf32>,
    %c0_i32_8 = arith.constant 0 : i32
    %12 = arith.cmpi eq, %arg1, %c0_i32_8 : i32
    %13 = arith.extui %12 : i1 to i32
    %c0_i32_9 = arith.constant 0 : i32
    %14 = arith.cmpi ne, %13, %c0_i32_9 : i32
    scf.if %14 {
      %c0_10 = arith.constant 0 : index
      %c0_11 = arith.constant 0 : index
      %15 = vector.load %arg6[%c0_10, %c0_11] : memref<8x1xf32, #tpu.memory_space<vmem>>, vector<8x1xf32>
      %c0_12 = arith.constant 0 : index
      %16 = memref.load %arg2[%c0_12] : memref<1xf32, #tpu.memory_space<smem>>
      %17 = vector.broadcast %16 : f32 to vector<8x1xf32>
      %18 = arith.addf %15, %17 : vector<8x1xf32>
      %cst_13 = arith.constant 0.000000e+00 : f32
      %19 = vector.broadcast %cst_13 : f32 to vector<8x1xf32>
      %20 = arith.subf %19, %18 : vector<8x1xf32>
      %21 = math.exp %20 : vector<8x1xf32>
      %cst_14 = arith.constant 1.000000e+00 : f32
      %22 = vector.broadcast %cst_14 : f32 to vector<8x1xf32>
      %23 = arith.addf %22, %21 : vector<8x1xf32>
      %cst_15 = arith.constant 1.000000e+00 : f32
      %24 = vector.broadcast %cst_15 : f32 to vector<8x1xf32>
      %25 = arith.divf %24, %23 : vector<8x1xf32>
      %c0_16 = arith.constant 0 : index
      %c0_17 = arith.constant 0 : index
      %26 = vector.load %arg5[%c0_16, %c0_17] : memref<8x1xf32, #tpu.memory_space<vmem>>, vector<8x1xf32>
      tpu.vector_store %arg5[%c0_16, %c0_17], %25 {strides = array<i32>} : memref<8x1xf32, #tpu.memory_space<vmem>>, vector<8x1xf32>,
    } else {
    }
    return
  }
  func.func @transform_0(%arg0: i32, %arg1: i32, %arg2: memref<1xf32, #tpu.memory_space<smem>>) -> (i32, i32) {
    %c0_i32 = arith.constant 0 : i32
    return %arg0, %arg1 : i32, i32
  }
  func.func @transform_1(%arg0: i32, %arg1: i32, %arg2: memref<1xf32, #tpu.memory_space<smem>>) -> (i32, i32) {
    %c0_i32 = arith.constant 0 : i32
    %c0_i32_0 = arith.constant 0 : i32
    return %c0_i32, %arg1 : i32, i32
  }
  func.func @transform_2(%arg0: i32, %arg1: i32, %arg2: memref<1xf32, #tpu.memory_space<smem>>) -> (i32, i32) {
    %c0_i32 = arith.constant 0 : i32
    %c0_i32_0 = arith.constant 0 : i32
    return %arg0, %c0_i32 : i32, i32
  }
}

</mosaic_0001>

<llo_original>
// kernel: tpu_custom_call.1
$region0: #{tpu_custom_call.1}
  #allocation0 [shape = 'u32[]', space=smem, size = 0x4, offset = 0x4, fixed_abs, tag = 'smem constant byte address 0x4 - core index']
  #allocation1 [shape = 'u32[72,128]{1,0:T(1,128)}', space=vmem, size = 0x9000, scoped, tag = 'internal scratch']
  #allocation2 [shape = 'f32[8,1]{1,0:T(8,128)}', space=vmem, size = 0x1000, scoped, tag = 'scratch operand']
  #allocation3 [shape = 's32[1]{0}', space=sflag, size = 0x4, scoped, tag = 'scoped memory for tpu_custom_call.1']
  #allocation4 [shape = 'f32[1]{0:T(128)S(6)}', space=smem, size = 0x200, scoped, tag = 'prefetched SMEM operand 0']
  %s0 = inlined_call_operand.<no memory space> [shape: f32[1], index: 0, kind: input, shape index: {}]
  %s1 = inlined_call_operand.hbm [shape: f32[8,32], index: 1, kind: input, shape index: {}]
  %s2 = inlined_call_operand.vmem [shape: f32[1,32], index: 2, kind: input, shape index: {}]
  %s3 = inlined_call_operand.vmem [shape: f32[8,1], index: 3, kind: output, shape index: {}]
  %s4 = sld [smem:[#allocation0]]
  $region30: #{tpu_custom_call.1} parent=0
    _
  %s6 = ssub.s32 1, %s4
  %s7 = scalar_select 0, %s6, %s4
  %8 = sst [smem:[#allocation4]] %s0
  $region1: #{tpu_custom_call.1} parent=0
    #allocation5 [shape = 'u8[4096]{0}', space=vmem, size = 0x1000, scoped, tag = 'input window, operand 1, single buffered']
    #allocation6 [shape = 's32[1]{0}', space=sflag, size = 0x4, scoped, tag = 'scoped memory for tpu_custom_call.1']
    %9 = vsyncpa [#allocation6], 0
    // Predicated region
    $region2: #{tpu_custom_call.1} parent=1 // pred_check
      _
    $region3: #{tpu_custom_call.1} parent=1 // pred_check_branch
      %11 = sbr.rel (0) target = $region5
    $region4: #{tpu_custom_call.1} parent=1 // pred_region
      %13 = vsyncadd [#allocation6], 0
      %s15 = sshll.u32 %s1, 4
      %s16 = int_to_ptr.hbm [resolvable:$true] %s15
      %s17 = sshll.u32 [#allocation5], 4
      %s18 = int_to_ptr.vmem [resolvable:$true] %s17
      %20 = dma.hbm_to_vmem [thread:$0]  %s16, 128, %s18, [#allocation6]
    $region5: #{tpu_custom_call.1} parent=1 // pred_fallthru
      _
    // Predicated region
    $region6: #{tpu_custom_call.1} parent=1 // pred_check
      _
    $region7: #{tpu_custom_call.1} parent=1 // pred_check_branch
      %22 = sbr.rel (0) target = $region9
    $region8: #{tpu_custom_call.1} parent=1 // pred_region
      _
    $region9: #{tpu_custom_call.1} parent=1 // pred_fallthru
      _
    // Predicated region
    $region10: #{tpu_custom_call.1} parent=1 // pred_check
      _
    $region11: #{tpu_custom_call.1} parent=1 // pred_check_branch
      %24 = sbr.rel (0) target = $region13
    $region12: #{tpu_custom_call.1} parent=1 // pred_region
      %26 = dma.done [#allocation6], 128
    $region13: #{tpu_custom_call.1} parent=1 // pred_fallthru
      _
    %p27 = scmp.eq.s32.totalorder 0, 0
    // Predicated region
    $region14: #{tpu_custom_call.1} parent=1 // pred_check
      %p28 = pneg %p27
    $region15: #{tpu_custom_call.1} parent=1 // pred_check_branch
      %30 = sbr.rel (%p28) target = $region17
    $region16: #{tpu_custom_call.1} parent=1 // pred_region
      %vm31 = vcmask 7168
      %32 = vst.msk [vmem:[#allocation2] sm:$0xff] %vm31, 0.0
    $region17: #{tpu_custom_call.1} parent=1 // pred_fallthru
      _
    %v33 = vld [vmem:[#allocation5] sm:$0xff]
    %v34 = vld [vmem:[%s2] sm:$0x1]
    %v36 = vperm.slane %v34, 0
    %v38 = vmul.f32 %v33, %v36
    %vm39 = vcmask 261120
    %v40 = vsel %vm39, %v38, 0.0
    %41 = vadd.xlane.f32.xlu0 %v40
    %v42 = vpop.xlane.xlu0 %41
    %v43 = vld [vmem:[#allocation2] sm:$0xff]
    %v44 = vadd.f32 %v43, %v42
    %vm45 = vcmask 7168
    %46 = vst.msk [vmem:[#allocation2] sm:$0xff] %vm45, %v44
    // Predicated region
    $region18: #{tpu_custom_call.1} parent=1 // pred_check
      %p47 = pneg %p27
    $region19: #{tpu_custom_call.1} parent=1 // pred_check_branch
      %49 = sbr.rel (%p47) target = $region21
    $region20: #{tpu_custom_call.1} parent=1 // pred_region
      %v50 = vld [vmem:[#allocation2] sm:$0xff]
      %s51 = sld [smem:[#allocation4]]
      %v52 = vstv %s51
      %v53 = vadd.f32 %v50, %v52
      %v54 = vsub.f32 0.0, %v53
      %v55 = vmul.f32 %v54, 1.442695
      %v56 = vpow.pop %v55
      %v57 = vadd.f32 %v56, 1.0
      %v58 = vrcp.pop %v57
      %v59 = vmul.f32 %v57, %v58
      %v60 = vsub.f32 1.0, %v59
      %v61 = vmul.f32 %v58, %v60
      %v62 = vadd.f32 %v58, %v61
      %vm63 = vweird.f32 %v57
      %vm64 = vweird.f32 %v58
      %vm65 = vmor %vm63, %vm64
      %v66 = vsel %vm65, %v58, %v62
      %v67 = vand.u32 2147483647, %v57
      %vm68 = vcmp.eq.f32.partialorder %v67, 8.507059e+37
      %v69 = vand.u32 %v57, 2147483648
      %v70 = vor.u32 1.1754944e-38, %v69
      %v71 = vsel %vm68, %v70, %v66
      %v72 = vmul.f32 1.0, %v71
      %73 = vst.msk [vmem:[%s3] sm:$0xff] %vm45, %v72
    $region21: #{tpu_custom_call.1} parent=1 // pred_fallthru
      _
    // Predicated region
    $region22: #{tpu_custom_call.1} parent=1 // pred_check
      _
    $region23: #{tpu_custom_call.1} parent=1 // pred_check_branch
      %75 = sbr.rel (0) target = $region25
    $region24: #{tpu_custom_call.1} parent=1 // pred_region
      _
    $region25: #{tpu_custom_call.1} parent=1 // pred_fallthru
      _
    // Predicated region
    $region26: #{tpu_custom_call.1} parent=1 // pred_check
      _
    $region27: #{tpu_custom_call.1} parent=1 // pred_check_branch
      %77 = sbr.rel (0) target = $region29
    $region28: #{tpu_custom_call.1} parent=1 // pred_region
      _
    $region29: #{tpu_custom_call.1} parent=1 // pred_fallthru
      _
    %78 = vsyncpa [#allocation6], 1

</llo_original>
